<compile_context>
chip_gen: v7x
topology: tpu7x:2x2x1
jax: 0.10.0
libtpu: 0.0.40
codegen_flags: <defaults>
</compile_context>

<pallas_src>
import jax
import jax.numpy as jnp
from jax.experimental import pallas as pl
from jax.experimental.pallas import tpu as pltpu


# Per-grid-step streaming target (input tile + output tile bytes). With
# double-buffered pipelining the VMEM footprint is ~2x this value.
_STEP_BYTES = 8 * 1024 * 1024
_VMEM_LIMIT = 32 * 1024 * 1024


def _round_up(x: int, m: int) -> int:
    return ((x + m - 1) // m) * m


def _pick_tiles(n, p, unit_bytes, align, step_bytes, total_bytes,
                max_batch_block):
    """Choose (batch_block, pixel_block) for an (n, p)-shaped streaming op.

    `unit_bytes` = HBM bytes (input + output) streamed per unit of the pixel
    axis; `align` = required block granularity along that axis (full-extent
    blocks are exempt from it). Targets ~step_bytes of traffic per grid step.
    """
    per_image = p * unit_bytes
    if per_image >= step_bytes:
        # Large feature map: one image per step, tile the pixel axis.
        nb = 1
        pb = max(align, (step_bytes // unit_bytes) // align * align)
        pb = min(pb, p)
    else:
        # Small feature map: take the whole pixel axis, fold batch into a step
        # to amortize the ~0.35us per-step overhead.
        pb = p
        nb = max(1, min(n, max_batch_block, step_bytes // max(per_image, 1)))
    # v7x has two TensorCores sharing the ("parallel","parallel") grid: avoid
    # collapsing a non-trivial problem into a single grid step.
    if pl.cdiv(n, nb) * pl.cdiv(p, pb) == 1 and total_bytes >= (2 << 20):
        if nb > 1:
            nb = (nb + 1) // 2
        elif pb > align:
            pb = max(align, _round_up(pb // 2, align))
    return nb, pb


def _make_vpu_kernel(c_in: int, c_out: int):
    """Unrolled VPU broadcast-FMA kernel for tiny channel counts.

    Works on both the dense 4-D layout (Nb, C, S, 128) and the 3-D fallback
    layout (Nb, C, T). Channel slabs are sliced lazily from the ref with
    static size-1 slices (no dim squeeze), and each output channel row is
    stored as soon as it is accumulated (no concat, small live set).
    """

    def kernel(w_ref, b_ref, x_ref, o_ref):
        # w_ref: (C_out, C_in) f32 SMEM scalars; b_ref: (C_out,) f32 SMEM.
        # x_ref: (Nb, C_in, ...) VMEM; o_ref: (Nb, C_out, ...) VMEM.
        for co in range(c_out):
            acc = w_ref[co, 0] * x_ref[:, 0:1].astype(jnp.float32) + b_ref[co]
            for ci in range(1, c_in):
                acc = acc + w_ref[co, ci] * x_ref[:, ci:ci + 1].astype(jnp.float32)
            o_ref[:, co:co + 1] = acc.astype(o_ref.dtype)

    return kernel


def _make_mxu_kernel(nb: int):
    """MXU matmul kernel: y[b] = W @ x[b] + bias for each image in the block."""

    def kernel(w_ref, b_ref, x_ref, o_ref):
        # w_ref: (C_out, C_in), b_ref: (C_out, 1)
        # x_ref: (nb, C_in, T),  o_ref: (nb, C_out, T)
        for i in range(nb):
            acc = jnp.dot(w_ref[...], x_ref[i], preferred_element_type=jnp.float32)
            o_ref[i] = (acc + b_ref[...]).astype(o_ref.dtype)

    return kernel


def segmentation_head(x_nchw: jax.Array, weight: jax.Array, bias: jax.Array,
                      *, step_bytes: int = _STEP_BYTES) -> jax.Array:
    """Apply a 1x1 conv (SegmentationHead) to an NCHW tensor.

    Args:
      x_nchw: (N, C_in, H, W)
      weight: (C_out, C_in) or raw nn.Conv2d weight (C_out, C_in, 1, 1)
      bias:   (C_out,)
    Returns:
      (N, C_out, H, W)
    """
    if weight.ndim == 4:
        weight = weight.reshape(weight.shape[0], weight.shape[1])
    N, C_in, H, W = x_nchw.shape
    C_out = weight.shape[0]
    HW = H * W

    itemsize = jnp.dtype(x_nchw.dtype).itemsize
    px_bytes = (C_in + C_out) * itemsize           # in + out bytes per pixel
    total_bytes = N * HW * px_bytes

    use_vpu = (C_in * C_out) <= 64

    cost = pl.CostEstimate(
        flops=2 * N * HW * C_in * C_out,
        transcendentals=0,
        bytes_accessed=total_bytes
        + weight.size * jnp.dtype(weight.dtype).itemsize
        + bias.size * jnp.dtype(bias.dtype).itemsize,
    )
    cparams = pltpu.CompilerParams(
        dimension_semantics=("parallel", "parallel"),
        vmem_limit_bytes=_VMEM_LIMIT,
    )

    if use_vpu and HW % 128 == 0:
        # Dense 4-D layout: pixels -> (HW//128, 128) so the last two dims of
        # every block are (sublane, lane)-dense even with 3-4 channels.
        p128 = HW // 128
        nb, s = _pick_tiles(N, p128, 128 * px_bytes, 8, step_bytes,
                            total_bytes, max_batch_block=N)
        kernel = _make_vpu_kernel(C_in, C_out)
        # SMEM is 32-bit scalar memory: keep the (tiny) params in f32.
        w_arg = weight.astype(jnp.float32)
        b_arg = bias.astype(jnp.float32)
        w_spec = pl.BlockSpec(memory_space=pltpu.MemorySpace.SMEM)
        b_spec = pl.BlockSpec(memory_space=pltpu.MemorySpace.SMEM)
        x_arr = x_nchw.reshape(N, C_in, p128, 128)          # free view
        grid = (pl.cdiv(N, nb), pl.cdiv(p128, s))
        x_spec = pl.BlockSpec((nb, C_in, s, 128), lambda n, p: (n, 0, p, 0))
        o_spec = pl.BlockSpec((nb, C_out, s, 128), lambda n, p: (n, 0, p, 0))
        out_shape = jax.ShapeDtypeStruct((N, C_out, p128, 128), x_nchw.dtype)
    elif use_vpu:
        # 3-D fallback (HW not a multiple of 128): pixels stay on the lane
        # axis; a partial final pixel block replaces the old pad/slice passes.
        nb, t = _pick_tiles(N, HW, px_bytes, 128, step_bytes,
                            total_bytes, max_batch_block=N)
        kernel = _make_vpu_kernel(C_in, C_out)
        w_arg = weight.astype(jnp.float32)
        b_arg = bias.astype(jnp.float32)
        w_spec = pl.BlockSpec(memory_space=pltpu.MemorySpace.SMEM)
        b_spec = pl.BlockSpec(memory_space=pltpu.MemorySpace.SMEM)
        x_arr = x_nchw.reshape(N, C_in, HW)                  # free view
        grid = (pl.cdiv(N, nb), pl.cdiv(HW, t))
        x_spec = pl.BlockSpec((nb, C_in, t), lambda n, p: (n, 0, p))
        o_spec = pl.BlockSpec((nb, C_out, t), lambda n, p: (n, 0, p))
        out_shape = jax.ShapeDtypeStruct((N, C_out, HW), x_nchw.dtype)
    else:
        # MXU path: W[C_out, C_in] @ x[C_in, T] per (image, pixel tile).
        # Batch block is kept small because the kernel unrolls over it.
        nb, t = _pick_tiles(N, HW, px_bytes, 128, step_bytes,
                            total_bytes, max_batch_block=8)
        kernel = _make_mxu_kernel(nb)
        w_arg = weight
        b_arg = bias.reshape(C_out, 1).astype(jnp.float32)
        w_spec = pl.BlockSpec((C_out, C_in), lambda n, p: (0, 0))
        b_spec = pl.BlockSpec((C_out, 1), lambda n, p: (0, 0))
        x_arr = x_nchw.reshape(N, C_in, HW)                  # free view
        grid = (pl.cdiv(N, nb), pl.cdiv(HW, t))
        x_spec = pl.BlockSpec((nb, C_in, t), lambda n, p: (n, 0, p))
        o_spec = pl.BlockSpec((nb, C_out, t), lambda n, p: (n, 0, p))
        out_shape = jax.ShapeDtypeStruct((N, C_out, HW), x_nchw.dtype)

    out = pl.pallas_call(
        kernel,
        out_shape=out_shape,
        grid_spec=pltpu.PrefetchScalarGridSpec(
            num_scalar_prefetch=0,
            grid=grid,
            in_specs=[w_spec, b_spec, x_spec],
            out_specs=o_spec,
        ),
        compiler_params=cparams,
        cost_estimate=cost,
    )(w_arg, b_arg, x_arr)

    return out.reshape(N, C_out, H, W)


def _reference(x, weight, bias):
    return jnp.einsum("nchw,oc->nohw", x, weight) + bias[None, :, None, None]


def _check_case(key, N, C_in, H, W, C_out, **kw):
    k_x, k_w, k_b = jax.random.split(key, 3)
    x = jax.random.normal(k_x, (N, C_in, H, W), dtype=jnp.float32)
    # nn.Conv2d(in, out, kernel_size=1) init range.
    bound = 1.0 / (C_in ** 0.5)
    weight = jax.random.uniform(k_w, (C_out, C_in), jnp.float32, -bound, bound)
    bias = jax.random.uniform(k_b, (C_out,), jnp.float32, -bound, bound)

    out = jax.block_until_ready(segmentation_head(x, weight, bias, **kw))
    ref = _reference(x, weight, bias)
    assert out.shape == (N, C_out, H, W)
    assert jnp.allclose(out, ref, atol=1e-5, rtol=1e-5), (
        f"mismatch for shape {(N, C_in, H, W)} -> C_out={C_out}")


if __name__ == "__main__":
    key = jax.random.PRNGKey(0)
    keys = jax.random.split(key, 6)

    # Primary UNet-head shape: tiny channels, HW % 128 == 0 -> dense 4-D VPU
    # path with the batch folded into a single grid step.
    _check_case(keys[0], N=2, C_in=4, H=16, W=16, C_out=3)
    # Larger channel counts -> MXU path.
    _check_case(keys[1], N=2, C_in=16, H=16, W=16, C_out=8)
    # HW not a multiple of 128 -> lane-dense 3-D fallback (single block).
    _check_case(keys[2], N=1, C_in=4, H=10, W=10, C_out=3)
    # Force a tiny per-step byte budget to exercise the partial-final-block
    # paths (no pad / slice passes are ever taken):
    _check_case(keys[3], N=1, C_in=4, H=16, W=96, C_out=3, step_bytes=8192)   # 4-D, partial sublane block
    _check_case(keys[4], N=1, C_in=4, H=20, W=20, C_out=3, step_bytes=8192)   # 3-D, partial pixel block
    _check_case(keys[5], N=1, C_in=16, H=20, W=20, C_out=8, step_bytes=8192)  # MXU, partial pixel block

    print("KERNEL_OK")
</pallas_src>

<mosaic_0001>
module attributes {stable_mosaic.version = 11 : i64} {
  func.func @kernel(%arg0: i32, %arg1: i32, %arg2: memref<3x4xf32, #tpu.memory_space<smem>>, %arg3: memref<3xf32, #tpu.memory_space<smem>>, %arg4: memref<2x4x2x128xf32, #tpu.memory_space<vmem>>, %arg5: memref<2x3x2x128xf32, #tpu.memory_space<vmem>>) attributes {dimension_semantics = [#tpu.dimension_semantics<parallel>, #tpu.dimension_semantics<parallel>], iteration_bounds = array<i64: 1, 1>, scalar_prefetch = 0 : i64, scratch_operands = 0 : i64, tpu.core_type = #tpu.core_type<tc>, window_params = [{transform_indices = @transform_0, window_bounds = array<i64: 3, 4>}, {transform_indices = @transform_1, window_bounds = array<i64: 3>}, {transform_indices = @transform_2, window_bounds = array<i64: 2, 4, 2, 128>}, {transform_indices = @transform_3, window_bounds = array<i64: 2, 3, 2, 128>}]} {
    %c0 = arith.constant 0 : index
    %c0_0 = arith.constant 0 : index
    %0 = memref.load %arg2[%c0, %c0_0] : memref<3x4xf32, #tpu.memory_space<smem>>
    %c0_1 = arith.constant 0 : index
    %c0_2 = arith.constant 0 : index
    %c0_3 = arith.constant 0 : index
    %c0_4 = arith.constant 0 : index
    %1 = vector.load %arg4[%c0_1, %c0_2, %c0_3, %c0_4] : memref<2x4x2x128xf32, #tpu.memory_space<vmem>>, vector<2x1x2x128xf32>
    %2 = vector.broadcast %0 : f32 to vector<2x1x2x128xf32>
    %3 = arith.mulf %2, %1 : vector<2x1x2x128xf32>
    %c0_5 = arith.constant 0 : index
    %4 = memref.load %arg3[%c0_5] : memref<3xf32, #tpu.memory_space<smem>>
    %5 = vector.broadcast %4 : f32 to vector<2x1x2x128xf32>
    %6 = arith.addf %3, %5 : vector<2x1x2x128xf32>
    %c0_6 = arith.constant 0 : index
    %c1 = arith.constant 1 : index
    %7 = memref.load %arg2[%c0_6, %c1] : memref<3x4xf32, #tpu.memory_space<smem>>
    %c0_7 = arith.constant 0 : index
    %c1_8 = arith.constant 1 : index
    %c0_9 = arith.constant 0 : index
    %c0_10 = arith.constant 0 : index
    %8 = vector.load %arg4[%c0_7, %c1_8, %c0_9, %c0_10] : memref<2x4x2x128xf32, #tpu.memory_space<vmem>>, vector<2x1x2x128xf32>
    %9 = vector.broadcast %7 : f32 to vector<2x1x2x128xf32>
    %10 = arith.mulf %9, %8 : vector<2x1x2x128xf32>
    %11 = arith.addf %6, %10 : vector<2x1x2x128xf32>
    %c0_11 = arith.constant 0 : index
    %c2 = arith.constant 2 : index
    %12 = memref.load %arg2[%c0_11, %c2] : memref<3x4xf32, #tpu.memory_space<smem>>
    %c0_12 = arith.constant 0 : index
    %c2_13 = arith.constant 2 : index
    %c0_14 = arith.constant 0 : index
    %c0_15 = arith.constant 0 : index
    %13 = vector.load %arg4[%c0_12, %c2_13, %c0_14, %c0_15] : memref<2x4x2x128xf32, #tpu.memory_space<vmem>>, vector<2x1x2x128xf32>
    %14 = vector.broadcast %12 : f32 to vector<2x1x2x128xf32>
    %15 = arith.mulf %14, %13 : vector<2x1x2x128xf32>
    %16 = arith.addf %11, %15 : vector<2x1x2x128xf32>
    %c0_16 = arith.constant 0 : index
    %c3 = arith.constant 3 : index
    %17 = memref.load %arg2[%c0_16, %c3] : memref<3x4xf32, #tpu.memory_space<smem>>
    %c0_17 = arith.constant 0 : index
    %c3_18 = arith.constant 3 : index
    %c0_19 = arith.constant 0 : index
    %c0_20 = arith.constant 0 : index
    %18 = vector.load %arg4[%c0_17, %c3_18, %c0_19, %c0_20] : memref<2x4x2x128xf32, #tpu.memory_space<vmem>>, vector<2x1x2x128xf32>
    %19 = vector.broadcast %17 : f32 to vector<2x1x2x128xf32>
    %20 = arith.mulf %19, %18 : vector<2x1x2x128xf32>
    %21 = arith.addf %16, %20 : vector<2x1x2x128xf32>
    %c0_21 = arith.constant 0 : index
    %c0_22 = arith.constant 0 : index
    %c0_23 = arith.constant 0 : index
    %c0_24 = arith.constant 0 : index
    %22 = vector.load %arg5[%c0_21, %c0_22, %c0_23, %c0_24] : memref<2x3x2x128xf32, #tpu.memory_space<vmem>>, vector<2x1x2x128xf32>
    tpu.vector_store %arg5[%c0_21, %c0_22, %c0_23, %c0_24], %21 {strides = array<i32>} : memref<2x3x2x128xf32, #tpu.memory_space<vmem>>, vector<2x1x2x128xf32>,
    %c1_25 = arith.constant 1 : index
    %c0_26 = arith.constant 0 : index
    %23 = memref.load %arg2[%c1_25, %c0_26] : memref<3x4xf32, #tpu.memory_space<smem>>
    %c0_27 = arith.constant 0 : index
    %c0_28 = arith.constant 0 : index
    %c0_29 = arith.constant 0 : index
    %c0_30 = arith.constant 0 : index
    %24 = vector.load %arg4[%c0_27, %c0_28, %c0_29, %c0_30] : memref<2x4x2x128xf32, #tpu.memory_space<vmem>>, vector<2x1x2x128xf32>
    %25 = vector.broadcast %23 : f32 to vector<2x1x2x128xf32>
    %26 = arith.mulf %25, %24 : vector<2x1x2x128xf32>
    %c1_31 = arith.constant 1 : index
    %27 = memref.load %arg3[%c1_31] : memref<3xf32, #tpu.memory_space<smem>>
    %28 = vector.broadcast %27 : f32 to vector<2x1x2x128xf32>
    %29 = arith.addf %26, %28 : vector<2x1x2x128xf32>
    %c1_32 = arith.constant 1 : index
    %c1_33 = arith.constant 1 : index
    %30 = memref.load %arg2[%c1_32, %c1_33] : memref<3x4xf32, #tpu.memory_space<smem>>
    %c0_34 = arith.constant 0 : index
    %c1_35 = arith.constant 1 : index
    %c0_36 = arith.constant 0 : index
    %c0_37 = arith.constant 0 : index
    %31 = vector.load %arg4[%c0_34, %c1_35, %c0_36, %c0_37] : memref<2x4x2x128xf32, #tpu.memory_space<vmem>>, vector<2x1x2x128xf32>
    %32 = vector.broadcast %30 : f32 to vector<2x1x2x128xf32>
    %33 = arith.mulf %32, %31 : vector<2x1x2x128xf32>
    %34 = arith.addf %29, %33 : vector<2x1x2x128xf32>
    %c1_38 = arith.constant 1 : index
    %c2_39 = arith.constant 2 : index
    %35 = memref.load %arg2[%c1_38, %c2_39] : memref<3x4xf32, #tpu.memory_space<smem>>
    %c0_40 = arith.constant 0 : index
    %c2_41 = arith.constant 2 : index
    %c0_42 = arith.constant 0 : index
    %c0_43 = arith.constant 0 : index
    %36 = vector.load %arg4[%c0_40, %c2_41, %c0_42, %c0_43] : memref<2x4x2x128xf32, #tpu.memory_space<vmem>>, vector<2x1x2x128xf32>
    %37 = vector.broadcast %35 : f32 to vector<2x1x2x128xf32>
    %38 = arith.mulf %37, %36 : vector<2x1x2x128xf32>
    %39 = arith.addf %34, %38 : vector<2x1x2x128xf32>
    %c1_44 = arith.constant 1 : index
    %c3_45 = arith.constant 3 : index
    %40 = memref.load %arg2[%c1_44, %c3_45] : memref<3x4xf32, #tpu.memory_space<smem>>
    %c0_46 = arith.constant 0 : index
    %c3_47 = arith.constant 3 : index
    %c0_48 = arith.constant 0 : index
    %c0_49 = arith.constant 0 : index
    %41 = vector.load %arg4[%c0_46, %c3_47, %c0_48, %c0_49] : memref<2x4x2x128xf32, #tpu.memory_space<vmem>>, vector<2x1x2x128xf32>
    %42 = vector.broadcast %40 : f32 to vector<2x1x2x128xf32>
    %43 = arith.mulf %42, %41 : vector<2x1x2x128xf32>
    %44 = arith.addf %39, %43 : vector<2x1x2x128xf32>
    %c0_50 = arith.constant 0 : index
    %c1_51 = arith.constant 1 : index
    %c0_52 = arith.constant 0 : index
    %c0_53 = arith.constant 0 : index
    %45 = vector.load %arg5[%c0_50, %c1_51, %c0_52, %c0_53] : memref<2x3x2x128xf32, #tpu.memory_space<vmem>>, vector<2x1x2x128xf32>
    tpu.vector_store %arg5[%c0_50, %c1_51, %c0_52, %c0_53], %44 {strides = array<i32>} : memref<2x3x2x128xf32, #tpu.memory_space<vmem>>, vector<2x1x2x128xf32>,
    %c2_54 = arith.constant 2 : index
    %c0_55 = arith.constant 0 : index
    %46 = memref.load %arg2[%c2_54, %c0_55] : memref<3x4xf32, #tpu.memory_space<smem>>
    %c0_56 = arith.constant 0 : index
    %c0_57 = arith.constant 0 : index
    %c0_58 = arith.constant 0 : index
    %c0_59 = arith.constant 0 : index
    %47 = vector.load %arg4[%c0_56, %c0_57, %c0_58, %c0_59] : memref<2x4x2x128xf32, #tpu.memory_space<vmem>>, vector<2x1x2x128xf32>
    %48 = vector.broadcast %46 : f32 to vector<2x1x2x128xf32>
    %49 = arith.mulf %48, %47 : vector<2x1x2x128xf32>
    %c2_60 = arith.constant 2 : index
    %50 = memref.load %arg3[%c2_60] : memref<3xf32, #tpu.memory_space<smem>>
    %51 = vector.broadcast %50 : f32 to vector<2x1x2x128xf32>
    %52 = arith.addf %49, %51 : vector<2x1x2x128xf32>
    %c2_61 = arith.constant 2 : index
    %c1_62 = arith.constant 1 : index
    %53 = memref.load %arg2[%c2_61, %c1_62] : memref<3x4xf32, #tpu.memory_space<smem>>
    %c0_63 = arith.constant 0 : index
    %c1_64 = arith.constant 1 : index
    %c0_65 = arith.constant 0 : index
    %c0_66 = arith.constant 0 : index
    %54 = vector.load %arg4[%c0_63, %c1_64, %c0_65, %c0_66] : memref<2x4x2x128xf32, #tpu.memory_space<vmem>>, vector<2x1x2x128xf32>
    %55 = vector.broadcast %53 : f32 to vector<2x1x2x128xf32>
    %56 = arith.mulf %55, %54 : vector<2x1x2x128xf32>
    %57 = arith.addf %52, %56 : vector<2x1x2x128xf32>
    %c2_67 = arith.constant 2 : index
    %c2_68 = arith.constant 2 : index
    %58 = memref.load %arg2[%c2_67, %c2_68] : memref<3x4xf32, #tpu.memory_space<smem>>
    %c0_69 = arith.constant 0 : index
    %c2_70 = arith.constant 2 : index
    %c0_71 = arith.constant 0 : index
    %c0_72 = arith.constant 0 : index
    %59 = vector.load %arg4[%c0_69, %c2_70, %c0_71, %c0_72] : memref<2x4x2x128xf32, #tpu.memory_space<vmem>>, vector<2x1x2x128xf32>
    %60 = vector.broadcast %58 : f32 to vector<2x1x2x128xf32>
    %61 = arith.mulf %60, %59 : vector<2x1x2x128xf32>
    %62 = arith.addf %57, %61 : vector<2x1x2x128xf32>
    %c2_73 = arith.constant 2 : index
    %c3_74 = arith.constant 3 : index
    %63 = memref.load %arg2[%c2_73, %c3_74] : memref<3x4xf32, #tpu.memory_space<smem>>
    %c0_75 = arith.constant 0 : index
    %c3_76 = arith.constant 3 : index
    %c0_77 = arith.constant 0 : index
    %c0_78 = arith.constant 0 : index
    %64 = vector.load %arg4[%c0_75, %c3_76, %c0_77, %c0_78] : memref<2x4x2x128xf32, #tpu.memory_space<vmem>>, vector<2x1x2x128xf32>
    %65 = vector.broadcast %63 : f32 to vector<2x1x2x128xf32>
    %66 = arith.mulf %65, %64 : vector<2x1x2x128xf32>
    %67 = arith.addf %62, %66 : vector<2x1x2x128xf32>
    %c0_79 = arith.constant 0 : index
    %c2_80 = arith.constant 2 : index
    %c0_81 = arith.constant 0 : index
    %c0_82 = arith.constant 0 : index
    %68 = vector.load %arg5[%c0_79, %c2_80, %c0_81, %c0_82] : memref<2x3x2x128xf32, #tpu.memory_space<vmem>>, vector<2x1x2x128xf32>
    tpu.vector_store %arg5[%c0_79, %c2_80, %c0_81, %c0_82], %67 {strides = array<i32>} : memref<2x3x2x128xf32, #tpu.memory_space<vmem>>, vector<2x1x2x128xf32>,
    return
  }
  func.func @transform_0(%arg0: i32, %arg1: i32) -> (i32, i32) {
    %c0_i32 = arith.constant 0 : i32
    %c0_i32_0 = arith.constant 0 : i32
    %c0_i32_1 = arith.constant 0 : i32
    return %c0_i32, %c0_i32_0 : i32, i32
  }
  func.func @transform_1(%arg0: i32, %arg1: i32) -> i32 {
    %c0_i32 = arith.constant 0 : i32
    %c0_i32_0 = arith.constant 0 : i32
    return %c0_i32 : i32
  }
  func.func @transform_2(%arg0: i32, %arg1: i32) -> (i32, i32, i32, i32) {
    %c0_i32 = arith.constant 0 : i32
    %c0_i32_0 = arith.constant 0 : i32
    %c0_i32_1 = arith.constant 0 : i32
    return %arg0, %c0_i32, %arg1, %c0_i32_0 : i32, i32, i32, i32
  }
  func.func @transform_3(%arg0: i32, %arg1: i32) -> (i32, i32, i32, i32) {
    %c0_i32 = arith.constant 0 : i32
    %c0_i32_0 = arith.constant 0 : i32
    %c0_i32_1 = arith.constant 0 : i32
    return %arg0, %c0_i32, %arg1, %c0_i32_0 : i32, i32, i32, i32
  }
}

</mosaic_0001>

<llo_original>
// kernel: tpu_custom_call.1
$region0: #{tpu_custom_call.1}
  #allocation0 [shape = 'u32[]', space=smem, size = 0x4, offset = 0x4, fixed_abs, tag = 'smem constant byte address 0x4 - core index']
  #allocation1 [shape = 'u32[144,128]{1,0:T(1,128)}', space=vmem, size = 0x12000, scoped, tag = 'internal scratch']
  %s0 = inlined_call_operand.hbm [shape: f32[3,4], index: 0, kind: input, shape index: {}]
  %s1 = inlined_call_operand.vmem [shape: f32[3], index: 1, kind: input, shape index: {}]
  %s2 = inlined_call_operand.hbm [shape: f32[2,4,2,128], index: 2, kind: input, shape index: {}]
  %s3 = inlined_call_operand.hbm [shape: f32[2,3,2,128], index: 3, kind: output, shape index: {}]
  %s4 = sld [smem:[#allocation0]]
  $region34: #{tpu_custom_call.1} parent=0
    _
  %s6 = ssub.s32 1, %s4
  %s7 = scalar_select 0, %s6, %s4
  $region1: #{tpu_custom_call.1} parent=0
    #allocation2 [shape = 'u8[2048]{0}', space=smem, size = 0x800, scoped, tag = 'input window, operand 0, single buffered']
    #allocation3 [shape = 's32[1]{0}', space=sflag, size = 0x4, scoped, tag = 'scoped memory for tpu_custom_call.1']
    #allocation4 [shape = 's32[1]{0}', space=sflag, size = 0x4, scoped, tag = 'scoped memory for tpu_custom_call.1']
    #allocation5 [shape = 's32[1]{0}', space=sflag, size = 0x4, scoped, tag = 'scoped memory for tpu_custom_call.1']
    #allocation6 [shape = 's32[1]{0}', space=sflag, size = 0x4, scoped, tag = 'scoped memory for tpu_custom_call.1']
    #allocation7 [shape = 'u8[512]{0}', space=smem, size = 0x200, scoped, tag = 'input window, operand 1, single buffered']
    #allocation8 [shape = 'u8[8192]{0}', space=vmem, size = 0x2000, scoped, tag = 'input window, operand 2, single buffered']
    #allocation9 [shape = 'u8[6144]{0}', space=vmem, size = 0x1800, scoped, tag = 'output window, operand 0, single buffered']
    %8 = vsyncpa [#allocation5], 0
    %9 = vsyncpa [#allocation6], 0
    %10 = vsyncpa [#allocation3], 0
    %11 = vsyncpa [#allocation4], 0
    // Predicated region
    $region2: #{tpu_custom_call.1} parent=1 // pred_check
      _
    $region3: #{tpu_custom_call.1} parent=1 // pred_check_branch
      %13 = sbr.rel (0) target = $region5
    $region4: #{tpu_custom_call.1} parent=1 // pred_region
      %s15 = ssub.s32 64, 64
      %16 = vsyncadd [#allocation5], %s15
      %19 = dma.hbm_to_smem %s0, 64, [#allocation2], [#allocation5]
    $region5: #{tpu_custom_call.1} parent=1 // pred_fallthru
      _
    // Predicated region
    $region6: #{tpu_custom_call.1} parent=1 // pred_check
      _
    $region7: #{tpu_custom_call.1} parent=1 // pred_check_branch
      %21 = sbr.rel (0) target = $region9
    $region8: #{tpu_custom_call.1} parent=1 // pred_region
      %s23 = ssub.s32 16, 16
      %24 = vsyncadd [#allocation6], %s23
      %s26 = sshll.u32 %s1, 4
      %s27 = int_to_ptr.vmem [resolvable:$true] %s26
      %29 = dma.vmem_to_smem %s27, 16, [#allocation7], [#allocation6]
    $region9: #{tpu_custom_call.1} parent=1 // pred_fallthru
      _
    // Predicated region
    $region10: #{tpu_custom_call.1} parent=1 // pred_check
      _
    $region11: #{tpu_custom_call.1} parent=1 // pred_check_branch
      %31 = sbr.rel (0) target = $region13
    $region12: #{tpu_custom_call.1} parent=1 // pred_region
      %s33 = ssub.s32 256, 256
      %34 = vsyncadd [#allocation3], %s33
      %s35 = sshll.u32 [#allocation8], 4
      %s36 = int_to_ptr.vmem [resolvable:$true] %s35
      %41 = dma.hbm_to_vmem [thread:$0]  %s2, 256, %s36, [#allocation3], 32, 32, 2
    $region13: #{tpu_custom_call.1} parent=1 // pred_fallthru
      _
    // Predicated region
    $region14: #{tpu_custom_call.1} parent=1 // pred_check
      _
    $region15: #{tpu_custom_call.1} parent=1 // pred_check_branch
      %43 = sbr.rel (0) target = $region17
    $region16: #{tpu_custom_call.1} parent=1 // pred_region
      %44 = dma.done [#allocation5], 64
    $region17: #{tpu_custom_call.1} parent=1 // pred_fallthru
      _
    // Predicated region
    $region18: #{tpu_custom_call.1} parent=1 // pred_check
      _
    $region19: #{tpu_custom_call.1} parent=1 // pred_check_branch
      %46 = sbr.rel (0) target = $region21
    $region20: #{tpu_custom_call.1} parent=1 // pred_region
      %47 = dma.done [#allocation6], 16
    $region21: #{tpu_custom_call.1} parent=1 // pred_fallthru
      _
    // Predicated region
    $region22: #{tpu_custom_call.1} parent=1 // pred_check
      _
    $region23: #{tpu_custom_call.1} parent=1 // pred_check_branch
      %49 = sbr.rel (0) target = $region25
    $region24: #{tpu_custom_call.1} parent=1 // pred_region
      %50 = dma.done [#allocation3], 256
    $region25: #{tpu_custom_call.1} parent=1 // pred_fallthru
      _
    %51 = sfence
    %s52 = sld [smem:[#allocation2]]
    %v53 = vld [vmem:[#allocation8] sm:$0x3]
    %v54 = vld [vmem:[#allocation8 + $0x8] sm:$0x3]
    %v55 = vstv %s52
    %v56 = vmul.f32 %v55, %v53
    %v57 = vmul.f32 %v55, %v54
    %s58 = sld [smem:[#allocation7]]
    %v59 = vstv %s58
    %v60 = vadd.f32 %v56, %v59
    %v61 = vadd.f32 %v57, %v59
    %s62 = sld [smem:[#allocation2 + $0x1]]
    %s63 = scalar_lea.vmem [#allocation8], 2
    %v64 = vld [vmem:[%s63] sm:$0x3]
    %v65 = vld [vmem:[%s63 + $0x8] sm:$0x3]
    %v66 = vstv %s62
    %v67 = vmul.f32 %v66, %v64
    %v68 = vmul.f32 %v66, %v65
    %v69 = vadd.f32 %v60, %v67
    %v70 = vadd.f32 %v61, %v68
    %s71 = sld [smem:[#allocation2 + $0x2]]
    %s72 = scalar_lea.vmem [#allocation8], 4
    %v73 = vld [vmem:[%s72] sm:$0x3]
    %v74 = vld [vmem:[%s72 + $0x8] sm:$0x3]
    %v75 = vstv %s71
    %v76 = vmul.f32 %v75, %v73
    %v77 = vmul.f32 %v75, %v74
    %v78 = vadd.f32 %v69, %v76
    %v79 = vadd.f32 %v70, %v77
    %s80 = sld [smem:[#allocation2 + $0x3]]
    %s81 = scalar_lea.vmem [#allocation8], 6
    %v82 = vld [vmem:[%s81] sm:$0x3]
    %v83 = vld [vmem:[%s81 + $0x8] sm:$0x3]
    %v84 = vstv %s80
    %v85 = vmul.f32 %v84, %v82
    %v86 = vmul.f32 %v84, %v83
    %v87 = vadd.f32 %v78, %v85
    %v88 = vadd.f32 %v79, %v86
    %89 = vst [vmem:[#allocation9] sm:$0x3] %v87
    %90 = vst [vmem:[#allocation9 + $0x6] sm:$0x3] %v88
    %s91 = sld [smem:[#allocation2 + $0x80]]
    %v92 = vld [vmem:[#allocation8] sm:$0x3]
    %v93 = vld [vmem:[#allocation8 + $0x8] sm:$0x3]
    %v94 = vstv %s91
    %v95 = vmul.f32 %v94, %v92
    %v96 = vmul.f32 %v94, %v93
    %s97 = sld [smem:[#allocation7 + $0x1]]
    %v98 = vstv %s97
    %v99 = vadd.f32 %v95, %v98
    %v100 = vadd.f32 %v96, %v98
    %s101 = sld [smem:[#allocation2 + $0x81]]
    %v102 = vld [vmem:[%s63] sm:$0x3]
    %v103 = vld [vmem:[%s63 + $0x8] sm:$0x3]
    %v104 = vstv %s101
    %v105 = vmul.f32 %v104, %v102
    %v106 = vmul.f32 %v104, %v103
    %v107 = vadd.f32 %v99, %v105
    %v108 = vadd.f32 %v100, %v106
    %s109 = sld [smem:[#allocation2 + $0x82]]
    %v110 = vld [vmem:[%s72] sm:$0x3]
    %v111 = vld [vmem:[%s72 + $0x8] sm:$0x3]
    %v112 = vstv %s109
    %v113 = vmul.f32 %v112, %v110
    %v114 = vmul.f32 %v112, %v111
    %v115 = vadd.f32 %v107, %v113
    %v116 = vadd.f32 %v108, %v114
    %s117 = sld [smem:[#allocation2 + $0x83]]
    %v118 = vld [vmem:[%s81] sm:$0x3]
    %v119 = vld [vmem:[%s81 + $0x8] sm:$0x3]
    %v120 = vstv %s117
    %v121 = vmul.f32 %v120, %v118
    %v122 = vmul.f32 %v120, %v119
    %v123 = vadd.f32 %v115, %v121
    %v124 = vadd.f32 %v116, %v122
    %s125 = scalar_lea.vmem [#allocation9], 2
    %126 = vst [vmem:[%s125] sm:$0x3] %v123
    %127 = vst [vmem:[%s125 + $0x6] sm:$0x3] %v124
    %s128 = sld [smem:[#allocation2 + $0x100]]
    %v129 = vld [vmem:[#allocation8] sm:$0x3]
    %v130 = vld [vmem:[#allocation8 + $0x8] sm:$0x3]
    %v131 = vstv %s128
    %v132 = vmul.f32 %v131, %v129
    %v133 = vmul.f32 %v131, %v130
    %s134 = sld [smem:[#allocation7 + $0x2]]
    %v135 = vstv %s134
    %v136 = vadd.f32 %v132, %v135
    %v137 = vadd.f32 %v133, %v135
    %s138 = sld [smem:[#allocation2 + $0x101]]
    %v139 = vld [vmem:[%s63] sm:$0x3]
    %v140 = vld [vmem:[%s63 + $0x8] sm:$0x3]
    %v141 = vstv %s138
    %v142 = vmul.f32 %v141, %v139
    %v143 = vmul.f32 %v141, %v140
    %v144 = vadd.f32 %v136, %v142
    %v145 = vadd.f32 %v137, %v143
    %s146 = sld [smem:[#allocation2 + $0x102]]
    %v147 = vld [vmem:[%s72] sm:$0x3]
    %v148 = vld [vmem:[%s72 + $0x8] sm:$0x3]
    %v149 = vstv %s146
    %v150 = vmul.f32 %v149, %v147
    %v151 = vmul.f32 %v149, %v148
    %v152 = vadd.f32 %v144, %v150
    %v153 = vadd.f32 %v145, %v151
    %s154 = sld [smem:[#allocation2 + $0x103]]
    %v155 = vld [vmem:[%s81] sm:$0x3]
    %v156 = vld [vmem:[%s81 + $0x8] sm:$0x3]
    %v157 = vstv %s154
    %v158 = vmul.f32 %v157, %v155
    %v159 = vmul.f32 %v157, %v156
    %v160 = vadd.f32 %v152, %v158
    %v161 = vadd.f32 %v153, %v159
    %s162 = scalar_lea.vmem [#allocation9], 4
    %163 = vst [vmem:[%s162] sm:$0x3] %v160
    %164 = vst [vmem:[%s162 + $0x6] sm:$0x3] %v161
    // Predicated region
    $region26: #{tpu_custom_call.1} parent=1 // pred_check
      _
    $region27: #{tpu_custom_call.1} parent=1 // pred_check_branch
      %166 = sbr.rel (0) target = $region29
    $region28: #{tpu_custom_call.1} parent=1 // pred_region
      %s168 = ssub.s32 192, 192
      %169 = vsyncadd [#allocation4], %s168
      %s170 = sshll.u32 [#allocation9], 4
      %s171 = int_to_ptr.vmem [resolvable:$true] %s170
      %176 = dma.vmem_to_hbm [thread:$0]  %s171, 192, %s3, [#allocation4], 32, 32, 2
    $region29: #{tpu_custom_call.1} parent=1 // pred_fallthru
      _
    // Predicated region
    $region30: #{tpu_custom_call.1} parent=1 // pred_check
      _
    $region31: #{tpu_custom_call.1} parent=1 // pred_check_branch
      %178 = sbr.rel (0) target = $region33
    $region32: #{tpu_custom_call.1} parent=1 // pred_region
      %179 = dma.done [#allocation4], 192
    $region33: #{tpu_custom_call.1} parent=1 // pred_fallthru
      _
    %180 = vsyncpa [#allocation3], 1
    %181 = vsyncpa [#allocation4], 1
    %182 = vsyncpa [#allocation5], 1
    %183 = vsyncpa [#allocation6], 1

</llo_original>
